<compile_context>
chip_gen: v6e
topology: v6e:2x2x1
jax: 0.10.0
libtpu: 0.0.40
codegen_flags: <defaults>
</compile_context>

<pallas_src>
import functools

import jax
import jax.numpy as jnp
from jax.experimental import pallas as pl
from jax.experimental.pallas import tpu as pltpu

LANE = 128


def _round_up(x, m):
    return ((x + m - 1) // m) * m


def _cdiv(a, b):
    return (a + b - 1) // b


def pad_params(params):
    """Pad weights/biases ONCE (outside the per-call path) to MXU-friendly shapes.

    - hidden / output contraction dims are zero-padded to 128 lanes (exactly
      preserves the math: padded hidden lanes stay 0 through ReLU, padded
      weight rows/cols are 0).
    - the input-feature dim of w1 is NOT padded: x streams through HBM at its
      real width and layer 1 contracts over the true f_in.
    - b3 stays un-padded so the true output width travels with the params.
    Accepts PyTorch-style 1-D biases as well as (1, n) biases.
    """
    w1 = jnp.asarray(params["w1"], jnp.float32)
    w2 = jnp.asarray(params["w2"], jnp.float32)
    w3 = jnp.asarray(params["w3"], jnp.float32)
    b1 = jnp.asarray(params["b1"], jnp.float32).reshape(1, -1)
    b2 = jnp.asarray(params["b2"], jnp.float32).reshape(1, -1)
    b3 = jnp.asarray(params["b3"], jnp.float32).reshape(1, -1)

    f_in, hidden = w1.shape
    out_features = w3.shape[1]
    h_pad = _round_up(hidden, LANE)
    o_pad = _round_up(out_features, LANE)

    return {
        "w1": jnp.zeros((f_in, h_pad), jnp.float32).at[:, :hidden].set(w1),
        "b1": jnp.zeros((1, h_pad), jnp.float32).at[:, :hidden].set(b1),
        "w2": jnp.zeros((h_pad, h_pad), jnp.float32).at[:hidden, :hidden].set(w2),
        "b2": jnp.zeros((1, h_pad), jnp.float32).at[:, :hidden].set(b2),
        "w3": jnp.zeros((h_pad, o_pad), jnp.float32).at[:hidden, :out_features].set(w3),
        "b3": b3,  # (1, out_features), un-padded: carries the true output width
    }


def blob_mlp_kernel(x_ref, w1_ref, b1_ref, w2_ref, b2_ref, w3_ref, b3_ref, o_ref):
    x = x_ref[...]                    # (tm, f_in) -- f_in NOT lane-padded
    f_in = x.shape[-1]
    w1 = w1_ref[...]                  # (f_in, h_pad)

    # ---- Layer 1: Linear + ReLU --------------------------------------------
    if f_in >= 8:
        h1 = jnp.dot(x, w1, preferred_element_type=jnp.float32) + b1_ref[...]
    else:
        # f_in is tiny (2 for blob data): a K=2 MXU pass is almost all masked
        # padding, so do f_in broadcast FMAs on the VPU instead.
        h1 = b1_ref[...]                                   # (1, h_pad)
        for k in range(f_in):
            h1 = h1 + x[:, k:k + 1] * w1[k:k + 1, :]       # (tm,1)*(1,h_pad)
    h1 = jnp.maximum(h1, 0.0)                              # (tm, h_pad)

    # ---- Layer 2: Linear + ReLU (fully 128-aligned MXU matmul) --------------
    h2 = jnp.dot(h1, w2_ref[...], preferred_element_type=jnp.float32) + b2_ref[...]
    h2 = jnp.maximum(h2, 0.0)

    # ---- Layer 3: Linear (logits). The 128-wide padded result lives only in
    # registers/VMEM; the HBM output keeps the real width. --------------------
    logits = jnp.dot(h2, w3_ref[...], preferred_element_type=jnp.float32)  # (tm, o_pad)
    o_out = o_ref.shape[-1]
    o_ref[...] = (logits[:, :o_out] + b3_ref[...]).astype(o_ref.dtype)


@functools.partial(jax.jit, static_argnames=("row_tile", "min_pallas_batch"))
def blob_model_forward(x, padded_params, *, row_tile=2048, min_pallas_batch=0):
    """x: (N, input_features) float32. padded_params: output of pad_params()."""
    p = padded_params
    x = x.astype(jnp.float32)
    n, f_in = x.shape
    h_pad = p["w1"].shape[1]
    o_pad = p["w3"].shape[1]
    o_out = p["b3"].shape[1]

    # Small-N fast path: below this batch size the pallas_call fixed overhead
    # dominates and XLA's fused dots are strictly faster (disabled by default).
    if n < min_pallas_batch:
        h1 = jnp.maximum(x @ p["w1"] + p["b1"], 0.0)
        h2 = jnp.maximum(h1 @ p["w2"] + p["b2"], 0.0)
        return (h2 @ p["w3"])[:, :o_out] + p["b3"]

    # Row tile: multiple of 8, no materialized batch padding. The ragged last
    # tile is handled by Pallas (OOB input rows are junk, their outputs are
    # dropped; no cross-row reductions, so valid rows stay exact).
    tm = min(row_tile, _round_up(n, 8))
    steps = _cdiv(n, tm)
    # v7x megacore: prefer an even grid-step count so ("parallel",) splits the
    # batch evenly across the two TensorCores (no-op on single-TC v5e/v6e).
    if steps > 1 and steps % 2 == 1:
        tm = _round_up(_cdiv(n, steps + 1), 8)
        steps = _cdiv(n, tm)

    flops = 2 * n * (f_in * h_pad + h_pad * h_pad + h_pad * o_pad)
    bytes_accessed = 4 * (
        n * f_in + n * o_out                              # streamed x / out (real width)
        + f_in * h_pad + h_pad * h_pad + h_pad * o_pad    # resident weights
        + 2 * h_pad + o_out                               # biases
    )

    return pl.pallas_call(
        blob_mlp_kernel,
        out_shape=jax.ShapeDtypeStruct((n, o_out), jnp.float32),
        grid=(steps,),
        in_specs=[
            pl.BlockSpec((tm, f_in), lambda i: (i, 0)),      # x: streamed, real width
            pl.BlockSpec((f_in, h_pad), lambda i: (0, 0)),   # w1: resident
            pl.BlockSpec((1, h_pad), lambda i: (0, 0)),      # b1: resident
            pl.BlockSpec((h_pad, h_pad), lambda i: (0, 0)),  # w2: resident
            pl.BlockSpec((1, h_pad), lambda i: (0, 0)),      # b2: resident
            pl.BlockSpec((h_pad, o_pad), lambda i: (0, 0)),  # w3: resident
            pl.BlockSpec((1, o_out), lambda i: (0, 0)),      # b3: resident, real width
        ],
        out_specs=pl.BlockSpec((tm, o_out), lambda i: (i, 0)),  # out: real width
        compiler_params=pltpu.CompilerParams(
            dimension_semantics=("parallel",),
            # Comfortable headroom even on v5e's 16 MiB scoped-VMEM default;
            # set explicitly so larger row_tile values stay safe on all chips.
            vmem_limit_bytes=32 * 1024 * 1024,
        ),
        cost_estimate=pl.CostEstimate(
            flops=flops, transcendentals=0, bytes_accessed=bytes_accessed
        ),
    )(x, p["w1"], p["b1"], p["w2"], p["b2"], p["w3"], p["b3"])


def init_params(key, input_features, output_features, hidden_units=8):
    """Deterministic init mirroring nn.Linear default (uniform +/- 1/sqrt(fan_in)).
    Weights stored (in, out) so the kernel computes x @ W + b == PyTorch x @ W.T + b."""
    def linear_init(k, fan_in, fan_out):
        kw, kb = jax.random.split(k)
        bound = 1.0 / jnp.sqrt(float(fan_in))
        w = jax.random.uniform(kw, (fan_in, fan_out), jnp.float32, -bound, bound)
        b = jax.random.uniform(kb, (1, fan_out), jnp.float32, -bound, bound)
        return w, b

    k1, k2, k3 = jax.random.split(key, 3)
    w1, b1 = linear_init(k1, input_features, hidden_units)
    w2, b2 = linear_init(k2, hidden_units, hidden_units)
    w3, b3 = linear_init(k3, hidden_units, output_features)
    return {"w1": w1, "b1": b1, "w2": w2, "b2": b2, "w3": w3, "b3": b3}


def reference_forward(x, p):
    h1 = jnp.maximum(x @ p["w1"] + p["b1"], 0.0)
    h2 = jnp.maximum(h1 @ p["w2"] + p["b2"], 0.0)
    return h2 @ p["w3"] + p["b3"]


if __name__ == "__main__":
    # Small shapes consistent with the module: blob classification,
    # 2 input features, 4 output classes, 8 hidden units, batch of 8.
    batch = 8
    input_features = 2
    output_features = 4
    hidden_units = 8

    key = jax.random.PRNGKey(0)
    kx, kp = jax.random.split(key)
    x = jax.random.normal(kx, (batch, input_features), dtype=jnp.float32)
    params = init_params(kp, input_features, output_features, hidden_units)
    padded = pad_params(params)  # hoisted: padded once, reused across calls

    out = jax.block_until_ready(blob_model_forward(x, padded))
    ref = reference_forward(x, params)
    assert out.shape == (batch, output_features)
    assert jnp.allclose(out, ref, atol=1e-5, rtol=1e-5), "mismatch vs reference"

    # Larger batch: multiple row tiles (even step count for v7x) + ragged last tile.
    big_n = 6000
    xb = jax.random.normal(jax.random.PRNGKey(1), (big_n, input_features), jnp.float32)
    outb = jax.block_until_ready(blob_model_forward(xb, padded, row_tile=1024))
    refb = reference_forward(xb, params)
    assert outb.shape == (big_n, output_features)
    assert jnp.allclose(outb, refb, atol=1e-4, rtol=1e-4), "mismatch vs reference (big batch)"

    print("KERNEL_OK")
</pallas_src>

<mosaic_0001>
module attributes {stable_mosaic.version = 11 : i64} {
  func.func @blob_mlp_kernel(%arg0: i32, %arg1: memref<8x2xf32, #tpu.memory_space<vmem>>, %arg2: memref<2x128xf32, #tpu.memory_space<vmem>>, %arg3: memref<1x128xf32, #tpu.memory_space<vmem>>, %arg4: memref<128x128xf32, #tpu.memory_space<vmem>>, %arg5: memref<1x128xf32, #tpu.memory_space<vmem>>, %arg6: memref<128x128xf32, #tpu.memory_space<vmem>>, %arg7: memref<1x4xf32, #tpu.memory_space<vmem>>, %arg8: memref<8x4xf32, #tpu.memory_space<vmem>>) attributes {dimension_semantics = [#tpu.dimension_semantics<parallel>], iteration_bounds = array<i64: 1>, scalar_prefetch = 0 : i64, scratch_operands = 0 : i64, tpu.core_type = #tpu.core_type<tc>, window_params = [{transform_indices = @transform_0, window_bounds = array<i64: 8, 2>}, {pipeline_mode = #tpu.pipeline_mode<synchronous>, transform_indices = @transform_1, window_bounds = array<i64: 2, 128>}, {pipeline_mode = #tpu.pipeline_mode<synchronous>, transform_indices = @transform_2, window_bounds = array<i64: 1, 128>}, {pipeline_mode = #tpu.pipeline_mode<synchronous>, transform_indices = @transform_3, window_bounds = array<i64: 128, 128>}, {pipeline_mode = #tpu.pipeline_mode<synchronous>, transform_indices = @transform_4, window_bounds = array<i64: 1, 128>}, {pipeline_mode = #tpu.pipeline_mode<synchronous>, transform_indices = @transform_5, window_bounds = array<i64: 128, 128>}, {pipeline_mode = #tpu.pipeline_mode<synchronous>, transform_indices = @transform_6, window_bounds = array<i64: 1, 4>}, {transform_indices = @transform_7, window_bounds = array<i64: 8, 4>}]} {
    %c0 = arith.constant 0 : index
    %c0_0 = arith.constant 0 : index
    %0 = vector.load %arg1[%c0, %c0_0] : memref<8x2xf32, #tpu.memory_space<vmem>>, vector<8x2xf32>
    %c0_1 = arith.constant 0 : index
    %c0_2 = arith.constant 0 : index
    %1 = vector.load %arg2[%c0_1, %c0_2] : memref<2x128xf32, #tpu.memory_space<vmem>>, vector<2x128xf32>
    %c0_3 = arith.constant 0 : index
    %c0_4 = arith.constant 0 : index
    %2 = vector.load %arg3[%c0_3, %c0_4] : memref<1x128xf32, #tpu.memory_space<vmem>>, vector<1x128xf32>
    %3 = vector.extract_strided_slice %0 {offsets = [0, 0], sizes = [8, 1], strides = [1, 1]} : vector<8x2xf32> to vector<8x1xf32>
    %4 = vector.extract_strided_slice %1 {offsets = [0, 0], sizes = [1, 128], strides = [1, 1]} : vector<2x128xf32> to vector<1x128xf32>
    %5 = vector.broadcast %3 : vector<8x1xf32> to vector<8x128xf32>
    %6 = vector.broadcast %4 : vector<1x128xf32> to vector<8x128xf32>
    %7 = arith.mulf %5, %6 : vector<8x128xf32>
    %8 = vector.broadcast %2 : vector<1x128xf32> to vector<8x128xf32>
    %9 = arith.addf %8, %7 : vector<8x128xf32>
    %10 = vector.extract_strided_slice %0 {offsets = [0, 1], sizes = [8, 1], strides = [1, 1]} : vector<8x2xf32> to vector<8x1xf32>
    %11 = vector.extract_strided_slice %1 {offsets = [1, 0], sizes = [1, 128], strides = [1, 1]} : vector<2x128xf32> to vector<1x128xf32>
    %12 = vector.broadcast %10 : vector<8x1xf32> to vector<8x128xf32>
    %13 = vector.broadcast %11 : vector<1x128xf32> to vector<8x128xf32>
    %14 = arith.mulf %12, %13 : vector<8x128xf32>
    %15 = arith.addf %9, %14 : vector<8x128xf32>
    %cst = arith.constant 0.000000e+00 : f32
    %16 = vector.broadcast %cst : f32 to vector<8x128xf32>
    %17 = arith.maximumf %15, %16 : vector<8x128xf32>
    %c0_5 = arith.constant 0 : index
    %c0_6 = arith.constant 0 : index
    %18 = vector.load %arg4[%c0_5, %c0_6] : memref<128x128xf32, #tpu.memory_space<vmem>>, vector<128x128xf32>
    %cst_7 = arith.constant dense<0.000000e+00> : vector<8x128xf32>
    %19 = tpu.matmul %17, %18, %cst_7 {dimension_numbers = #tpu.dot_dimension_numbers<[1], [0], [0], [1], [0, 0, 1, 1], [], []>} : vector<8x128xf32>, vector<128x128xf32>, vector<8x128xf32> -> vector<8x128xf32>
    %c0_8 = arith.constant 0 : index
    %c0_9 = arith.constant 0 : index
    %20 = vector.load %arg5[%c0_8, %c0_9] : memref<1x128xf32, #tpu.memory_space<vmem>>, vector<1x128xf32>
    %21 = vector.broadcast %20 : vector<1x128xf32> to vector<8x128xf32>
    %22 = arith.addf %19, %21 : vector<8x128xf32>
    %cst_10 = arith.constant 0.000000e+00 : f32
    %23 = vector.broadcast %cst_10 : f32 to vector<8x128xf32>
    %24 = arith.maximumf %22, %23 : vector<8x128xf32>
    %c0_11 = arith.constant 0 : index
    %c0_12 = arith.constant 0 : index
    %25 = vector.load %arg6[%c0_11, %c0_12] : memref<128x128xf32, #tpu.memory_space<vmem>>, vector<128x128xf32>
    %cst_13 = arith.constant dense<0.000000e+00> : vector<8x128xf32>
    %26 = tpu.matmul %24, %25, %cst_13 {dimension_numbers = #tpu.dot_dimension_numbers<[1], [0], [0], [1], [0, 0, 1, 1], [], []>} : vector<8x128xf32>, vector<128x128xf32>, vector<8x128xf32> -> vector<8x128xf32>
    %27 = vector.extract_strided_slice %26 {offsets = [0, 0], sizes = [8, 4], strides = [1, 1]} : vector<8x128xf32> to vector<8x4xf32>
    %c0_14 = arith.constant 0 : index
    %c0_15 = arith.constant 0 : index
    %28 = vector.load %arg7[%c0_14, %c0_15] : memref<1x4xf32, #tpu.memory_space<vmem>>, vector<1x4xf32>
    %29 = vector.broadcast %28 : vector<1x4xf32> to vector<8x4xf32>
    %30 = arith.addf %27, %29 : vector<8x4xf32>
    %c0_16 = arith.constant 0 : index
    %c0_17 = arith.constant 0 : index
    %31 = vector.load %arg8[%c0_16, %c0_17] : memref<8x4xf32, #tpu.memory_space<vmem>>, vector<8x4xf32>
    tpu.vector_store %arg8[%c0_16, %c0_17], %30 {strides = array<i32>} : memref<8x4xf32, #tpu.memory_space<vmem>>, vector<8x4xf32>,
    return
  }
  func.func @transform_0(%arg0: i32) -> (i32, i32) {
    %c0_i32 = arith.constant 0 : i32
    %c0_i32_0 = arith.constant 0 : i32
    return %arg0, %c0_i32 : i32, i32
  }
  func.func @transform_1(%arg0: i32) -> (i32, i32) {
    %c0_i32 = arith.constant 0 : i32
    %c0_i32_0 = arith.constant 0 : i32
    %c0_i32_1 = arith.constant 0 : i32
    return %c0_i32, %c0_i32_0 : i32, i32
  }
  func.func @transform_2(%arg0: i32) -> (i32, i32) {
    %c0_i32 = arith.constant 0 : i32
    %c0_i32_0 = arith.constant 0 : i32
    %c0_i32_1 = arith.constant 0 : i32
    return %c0_i32, %c0_i32_0 : i32, i32
  }
  func.func @transform_3(%arg0: i32) -> (i32, i32) {
    %c0_i32 = arith.constant 0 : i32
    %c0_i32_0 = arith.constant 0 : i32
    %c0_i32_1 = arith.constant 0 : i32
    return %c0_i32, %c0_i32_0 : i32, i32
  }
  func.func @transform_4(%arg0: i32) -> (i32, i32) {
    %c0_i32 = arith.constant 0 : i32
    %c0_i32_0 = arith.constant 0 : i32
    %c0_i32_1 = arith.constant 0 : i32
    return %c0_i32, %c0_i32_0 : i32, i32
  }
  func.func @transform_5(%arg0: i32) -> (i32, i32) {
    %c0_i32 = arith.constant 0 : i32
    %c0_i32_0 = arith.constant 0 : i32
    %c0_i32_1 = arith.constant 0 : i32
    return %c0_i32, %c0_i32_0 : i32, i32
  }
  func.func @transform_6(%arg0: i32) -> (i32, i32) {
    %c0_i32 = arith.constant 0 : i32
    %c0_i32_0 = arith.constant 0 : i32
    %c0_i32_1 = arith.constant 0 : i32
    return %c0_i32, %c0_i32_0 : i32, i32
  }
  func.func @transform_7(%arg0: i32) -> (i32, i32) {
    %c0_i32 = arith.constant 0 : i32
    %c0_i32_0 = arith.constant 0 : i32
    return %arg0, %c0_i32 : i32, i32
  }
}

</mosaic_0001>

<llo_original>
// kernel: blob_model_forward.1
$region0: #{blob_model_forward.1}
  #allocation0 [shape = 'u32[]', space=smem, size = 0x4, offset = 0x4, fixed_abs, tag = 'smem constant byte address 0x4 - core index']
  #allocation1 [shape = 'u32[144,128]{1,0:T(1,128)}', space=vmem, size = 0x12000, scoped, tag = 'internal scratch']
  %s0 = inlined_call_operand.vmem [shape: f32[8,2], index: 0, kind: input, shape index: {}]
  %s1 = inlined_call_operand.vmem [shape: f32[2,128], index: 1, kind: input, shape index: {}]
  %s2 = inlined_call_operand.vmem [shape: f32[1,128], index: 2, kind: input, shape index: {}]
  %s3 = inlined_call_operand.hbm [shape: f32[128,128], index: 3, kind: input, shape index: {}]
  %s4 = inlined_call_operand.vmem [shape: f32[1,128], index: 4, kind: input, shape index: {}]
  %s5 = inlined_call_operand.hbm [shape: f32[128,128], index: 5, kind: input, shape index: {}]
  %s6 = inlined_call_operand.vmem [shape: f32[1,4], index: 6, kind: input, shape index: {}]
  %s7 = inlined_call_operand.vmem [shape: f32[8,4], index: 7, kind: output, shape index: {}]
  %s8 = sld [smem:[#allocation0]]
  $region46: #{blob_model_forward.1} parent=0
    _
  %s10 = ssub.s32 1, %s8
  %s11 = scalar_select 0, %s10, %s8
  $region1: #{blob_model_forward.1} parent=0
    #allocation2 [shape = 'u8[65536]{0}', space=vmem, size = 0x10000, scoped, tag = 'input window, operand 3, single buffered']
    #allocation3 [shape = 's32[1]{0}', space=sflag, size = 0x4, scoped, tag = 'scoped memory for blob_model_forward.1']
    #allocation4 [shape = 'u8[65536]{0}', space=vmem, size = 0x10000, scoped, tag = 'input window, operand 5, single buffered']
    #allocation5 [shape = 's32[1]{0}', space=sflag, size = 0x4, scoped, tag = 'scoped memory for blob_model_forward.1']
    %12 = vsyncpa [#allocation3], 0
    %13 = vsyncpa [#allocation5], 0
    // Predicated region
    $region2: #{blob_model_forward.1} parent=1 // pred_check
      _
    $region3: #{blob_model_forward.1} parent=1 // pred_check_branch
      %15 = sbr.rel (0) target = $region5
    $region4: #{blob_model_forward.1} parent=1 // pred_region
      _
    $region5: #{blob_model_forward.1} parent=1 // pred_fallthru
      _
    // Predicated region
    $region6: #{blob_model_forward.1} parent=1 // pred_check
      _
    $region7: #{blob_model_forward.1} parent=1 // pred_check_branch
      %17 = sbr.rel (0) target = $region9
    $region8: #{blob_model_forward.1} parent=1 // pred_region
      _
    $region9: #{blob_model_forward.1} parent=1 // pred_fallthru
      _
    // Predicated region
    $region10: #{blob_model_forward.1} parent=1 // pred_check
      _
    $region11: #{blob_model_forward.1} parent=1 // pred_check_branch
      %19 = sbr.rel (0) target = $region13
    $region12: #{blob_model_forward.1} parent=1 // pred_region
      _
    $region13: #{blob_model_forward.1} parent=1 // pred_fallthru
      _
    // Predicated region
    $region14: #{blob_model_forward.1} parent=1 // pred_check
      _
    $region15: #{blob_model_forward.1} parent=1 // pred_check_branch
      %21 = sbr.rel (0) target = $region17
    $region16: #{blob_model_forward.1} parent=1 // pred_region
      %s23 = ssub.s32 2048, 2048
      %24 = vsyncadd [#allocation3], %s23
      %s25 = sshll.u32 [#allocation2], 4
      %s26 = int_to_ptr.vmem [resolvable:$true] %s25
      %31 = dma.hbm_to_vmem [thread:$0]  %s3, 2048, %s26, [#allocation3], 128, 128, 8
    $region17: #{blob_model_forward.1} parent=1 // pred_fallthru
      _
    // Predicated region
    $region18: #{blob_model_forward.1} parent=1 // pred_check
      _
    $region19: #{blob_model_forward.1} parent=1 // pred_check_branch
      %33 = sbr.rel (0) target = $region21
    $region20: #{blob_model_forward.1} parent=1 // pred_region
      _
    $region21: #{blob_model_forward.1} parent=1 // pred_fallthru
      _
    // Predicated region
    $region22: #{blob_model_forward.1} parent=1 // pred_check
      _
    $region23: #{blob_model_forward.1} parent=1 // pred_check_branch
      %35 = sbr.rel (0) target = $region25
    $region24: #{blob_model_forward.1} parent=1 // pred_region
      %s37 = ssub.s32 2048, 2048
      %38 = vsyncadd [#allocation5], %s37
      %s39 = sshll.u32 [#allocation4], 4
      %s40 = int_to_ptr.vmem [resolvable:$true] %s39
      %45 = dma.hbm_to_vmem [thread:$0]  %s5, 2048, %s40, [#allocation5], 128, 128, 8
    $region25: #{blob_model_forward.1} parent=1 // pred_fallthru
      _
    // Predicated region
    $region26: #{blob_model_forward.1} parent=1 // pred_check
      _
    $region27: #{blob_model_forward.1} parent=1 // pred_check_branch
      %47 = sbr.rel (0) target = $region29
    $region28: #{blob_model_forward.1} parent=1 // pred_region
      _
    $region29: #{blob_model_forward.1} parent=1 // pred_fallthru
      _
    // Predicated region
    $region30: #{blob_model_forward.1} parent=1 // pred_check
      _
    $region31: #{blob_model_forward.1} parent=1 // pred_check_branch
      %49 = sbr.rel (0) target = $region33
    $region32: #{blob_model_forward.1} parent=1 // pred_region
      %50 = dma.done [#allocation3], 2048
    $region33: #{blob_model_forward.1} parent=1 // pred_fallthru
      _
    // Predicated region
    $region34: #{blob_model_forward.1} parent=1 // pred_check
      _
    $region35: #{blob_model_forward.1} parent=1 // pred_check_branch
      %52 = sbr.rel (0) target = $region37
    $region36: #{blob_model_forward.1} parent=1 // pred_region
      %53 = dma.done [#allocation5], 2048
    $region37: #{blob_model_forward.1} parent=1 // pred_fallthru
      _
    %v54 = vld [vmem:[%s0] sm:$0xff]
    %v55 = vld [vmem:[%s1] sm:$0x3]
    %v56 = vld [vmem:[%s2] sm:$0x1]
    %58 = vset.pattern.permute.xlu0 0
    %59 = vperm.xlu0 %58, %v54
    %v60 = vpop.permute.xlu0 %59
    %v62 = vlaneseq
    %v63 = vshrl.u32 %v62, 7
    %v64 = vsub.s32 0, %v63
    %v65 = vrot.slane %v55, %v64
    %v66 = vmul.f32 %v60, %v65
    %v68 = vlaneseq
    %v69 = vshrl.u32 %v68, 7
    %v70 = vsub.s32 0, %v69
    %v71 = vrot.slane %v56, %v70
    %v73 = vadd.f32 %v71, %v66
    %74 = vset.pattern.permute.xlu0 1
    %75 = vperm.xlu0 %74, %v54
    %v76 = vpop.permute.xlu0 %75
    %v78 = vlaneseq
    %v79 = vshrl.u32 %v78, 7
    %v80 = vsub.s32 1, %v79
    %v81 = vrot.slane %v55, %v80
    %v82 = vmul.f32 %v76, %v81
    %v83 = vadd.f32 %v73, %v82
    %v84 = vmax.f32 %v83, 0.0
    %v85 = vld [vmem:[#allocation2] sm:$0xff]
    %v86 = vld [vmem:[#allocation2 + $0x8] sm:$0xff]
    %v87 = vld [vmem:[#allocation2 + $0x10] sm:$0xff]
    %v88 = vld [vmem:[#allocation2 + $0x18] sm:$0xff]
    %v89 = vld [vmem:[#allocation2 + $0x20] sm:$0xff]
    %v90 = vld [vmem:[#allocation2 + $0x28] sm:$0xff]
    %v91 = vld [vmem:[#allocation2 + $0x30] sm:$0xff]
    %v92 = vld [vmem:[#allocation2 + $0x38] sm:$0xff]
    %v93 = vld [vmem:[#allocation2 + $0x40] sm:$0xff]
    %v94 = vld [vmem:[#allocation2 + $0x48] sm:$0xff]
    %v95 = vld [vmem:[#allocation2 + $0x50] sm:$0xff]
    %v96 = vld [vmem:[#allocation2 + $0x58] sm:$0xff]
    %v97 = vld [vmem:[#allocation2 + $0x60] sm:$0xff]
    %v98 = vld [vmem:[#allocation2 + $0x68] sm:$0xff]
    %v99 = vld [vmem:[#allocation2 + $0x70] sm:$0xff]
    %v100 = vld [vmem:[#allocation2 + $0x78] sm:$0xff]
    %v101 = vld [vmem:[%s4] sm:$0x1]
    %v103 = vlaneseq
    %v104 = vshrl.u32 %v103, 7
    %v105 = vsub.s32 0, %v104
    %v106 = vrot.slane %v101, %v105
    %108 = vmatprep.subr.mxu0 0.0
    %109 = vmatpush1.msra.mxu0 %v100
    %110 = vmatprep.subr.mxu0 0.0
    %111 = vmatpush1.msra.mxu0 %v99
    %112 = vmatprep.subr.mxu0 0.0
    %113 = vmatpush1.msra.mxu0 %v98
    %114 = vmatprep.subr.mxu0 0.0
    %115 = vmatpush1.msra.mxu0 %v97
    %116 = vmatprep.subr.mxu0 0.0
    %117 = vmatpush1.msra.mxu0 %v96
    %118 = vmatprep.subr.mxu0 0.0
    %119 = vmatpush1.msra.mxu0 %v95
    %120 = vmatprep.subr.mxu0 0.0
    %121 = vmatpush1.msra.mxu0 %v94
    %122 = vmatprep.subr.mxu0 0.0
    %123 = vmatpush1.msra.mxu0 %v93
    %124 = vmatprep.subr.mxu0 0.0
    %125 = vmatpush1.msra.mxu0 %v92
    %126 = vmatprep.subr.mxu0 0.0
    %127 = vmatpush1.msra.mxu0 %v91
    %128 = vmatprep.subr.mxu0 0.0
    %129 = vmatpush1.msra.mxu0 %v90
    %130 = vmatprep.subr.mxu0 0.0
    %131 = vmatpush1.msra.mxu0 %v89
    %132 = vmatprep.subr.mxu0 0.0
    %133 = vmatpush1.msra.mxu0 %v88
    %134 = vmatprep.subr.mxu0 0.0
    %135 = vmatpush1.msra.mxu0 %v87
    %136 = vmatprep.subr.mxu0 0.0
    %137 = vmatpush1.msra.mxu0 %v86
    %138 = vmatprep.subr.mxu0 0.0
    %139 = vmatpush1.msra.mxu0 %v85
    %140 = vmatprep.subr.mxu0 0.0
    %141 = vmatpush2.msra.mxu0 0.0
    %142 = vmatprep.subr.mxu0 0.0
    %143 = vmatpush2.msra.mxu0 0.0
    %144 = vmatprep.subr.mxu0 0.0
    %145 = vmatpush2.msra.mxu0 0.0
    %146 = vmatprep.subr.mxu0 0.0
    %147 = vmatpush2.msra.mxu0 0.0
    %148 = vmatprep.subr.mxu0 0.0
    %149 = vmatpush2.msra.mxu0 0.0
    %150 = vmatprep.subr.mxu0 0.0
    %151 = vmatpush2.msra.mxu0 0.0
    %152 = vmatprep.subr.mxu0 0.0
    %153 = vmatpush2.msra.mxu0 0.0
    %154 = vmatprep.subr.mxu0 0.0
    %155 = vmatpush2.msra.mxu0 0.0
    %156 = vmatprep.subr.mxu0 0.0
    %157 = vmatpush2.msra.mxu0 0.0
    %158 = vmatprep.subr.mxu0 0.0
    %159 = vmatpush2.msra.mxu0 0.0
    %160 = vmatprep.subr.mxu0 0.0
    %161 = vmatpush2.msra.mxu0 0.0
    %162 = vmatprep.subr.mxu0 0.0
    %163 = vmatpush2.msra.mxu0 0.0
    %164 = vmatprep.subr.mxu0 0.0
    %165 = vmatpush2.msra.mxu0 0.0
    %166 = vmatprep.subr.mxu0 0.0
    %167 = vmatpush2.msra.mxu0 0.0
    %168 = vmatprep.subr.mxu0 0.0
    %169 = vmatpush2.msra.mxu0 0.0
    %170 = vmatprep.subr.mxu0 0.0
    %171 = vmatpush2.msra.mxu0 0.0
    %172 = vmatprep.mubr.f32.mxu0 0.0
    %173 = vmatmul.mubr.f32.gmra.mxu0 %v84
    %v174 = vpop.f32.mrf.mxu0
    %v175 = vadd.f32 %v106, %v174
    %v176 = vpop.f32.mrf.mxu0
    %177 = vdwg.mxu0
    %v178 = vmax.f32 %v175, 0.0
    %v179 = vld [vmem:[#allocation4] sm:$0xff]
    %v180 = vld [vmem:[#allocation4 + $0x8] sm:$0xff]
    %v181 = vld [vmem:[#allocation4 + $0x10] sm:$0xff]
    %v182 = vld [vmem:[#allocation4 + $0x18] sm:$0xff]
    %v183 = vld [vmem:[#allocation4 + $0x20] sm:$0xff]
    %v184 = vld [vmem:[#allocation4 + $0x28] sm:$0xff]
    %v185 = vld [vmem:[#allocation4 + $0x30] sm:$0xff]
    %v186 = vld [vmem:[#allocation4 + $0x38] sm:$0xff]
    %v187 = vld [vmem:[#allocation4 + $0x40] sm:$0xff]
    %v188 = vld [vmem:[#allocation4 + $0x48] sm:$0xff]
    %v189 = vld [vmem:[#allocation4 + $0x50] sm:$0xff]
    %v190 = vld [vmem:[#allocation4 + $0x58] sm:$0xff]
    %v191 = vld [vmem:[#allocation4 + $0x60] sm:$0xff]
    %v192 = vld [vmem:[#allocation4 + $0x68] sm:$0xff]
    %v193 = vld [vmem:[#allocation4 + $0x70] sm:$0xff]
    %v194 = vld [vmem:[#allocation4 + $0x78] sm:$0xff]
    %195 = vmatprep.subr.mxu0 0.0
    %196 = vmatpush1.msra.mxu0 %v194
    %197 = vmatprep.subr.mxu0 0.0
    %198 = vmatpush1.msra.mxu0 %v193
    %199 = vmatprep.subr.mxu0 0.0
    %200 = vmatpush1.msra.mxu0 %v192
    %201 = vmatprep.subr.mxu0 0.0
    %202 = vmatpush1.msra.mxu0 %v191
    %203 = vmatprep.subr.mxu0 0.0
    %204 = vmatpush1.msra.mxu0 %v190
    %205 = vmatprep.subr.mxu0 0.0
    %206 = vmatpush1.msra.mxu0 %v189
    %207 = vmatprep.subr.mxu0 0.0
    %208 = vmatpush1.msra.mxu0 %v188
    %209 = vmatprep.subr.mxu0 0.0
    %210 = vmatpush1.msra.mxu0 %v187
    %211 = vmatprep.subr.mxu0 0.0
    %212 = vmatpush1.msra.mxu0 %v186
    %213 = vmatprep.subr.mxu0 0.0
    %214 = vmatpush1.msra.mxu0 %v185
    %215 = vmatprep.subr.mxu0 0.0
    %216 = vmatpush1.msra.mxu0 %v184
    %217 = vmatprep.subr.mxu0 0.0
    %218 = vmatpush1.msra.mxu0 %v183
    %219 = vmatprep.subr.mxu0 0.0
    %220 = vmatpush1.msra.mxu0 %v182
    %221 = vmatprep.subr.mxu0 0.0
    %222 = vmatpush1.msra.mxu0 %v181
    %223 = vmatprep.subr.mxu0 0.0
    %224 = vmatpush1.msra.mxu0 %v180
    %225 = vmatprep.subr.mxu0 0.0
    %226 = vmatpush1.msra.mxu0 %v179
    %227 = vmatprep.subr.mxu0 0.0
    %228 = vmatpush2.msra.mxu0 0.0
    %229 = vmatprep.subr.mxu0 0.0
    %230 = vmatpush2.msra.mxu0 0.0
    %231 = vmatprep.subr.mxu0 0.0
    %232 = vmatpush2.msra.mxu0 0.0
    %233 = vmatprep.subr.mxu0 0.0
    %234 = vmatpush2.msra.mxu0 0.0
    %235 = vmatprep.subr.mxu0 0.0
    %236 = vmatpush2.msra.mxu0 0.0
    %237 = vmatprep.subr.mxu0 0.0
    %238 = vmatpush2.msra.mxu0 0.0
    %239 = vmatprep.subr.mxu0 0.0
    %240 = vmatpush2.msra.mxu0 0.0
    %241 = vmatprep.subr.mxu0 0.0
    %242 = vmatpush2.msra.mxu0 0.0
    %243 = vmatprep.subr.mxu0 0.0
    %244 = vmatpush2.msra.mxu0 0.0
    %245 = vmatprep.subr.mxu0 0.0
    %246 = vmatpush2.msra.mxu0 0.0
    %247 = vmatprep.subr.mxu0 0.0
    %248 = vmatpush2.msra.mxu0 0.0
    %249 = vmatprep.subr.mxu0 0.0
    %250 = vmatpush2.msra.mxu0 0.0
    %251 = vmatprep.subr.mxu0 0.0
    %252 = vmatpush2.msra.mxu0 0.0
    %253 = vmatprep.subr.mxu0 0.0
    %254 = vmatpush2.msra.mxu0 0.0
    %255 = vmatprep.subr.mxu0 0.0
    %256 = vmatpush2.msra.mxu0 0.0
    %257 = vmatprep.subr.mxu0 0.0
    %258 = vmatpush2.msra.mxu0 0.0
    %259 = vmatprep.mubr.f32.mxu0 0.0
    %260 = vmatmul.mubr.f32.gmra.mxu0 %v178
    %v261 = vpop.f32.mrf.mxu0
    %v262 = vadd.f32 0.0, %v261
    %v263 = vpop.f32.mrf.mxu0
    %264 = vdwg.mxu0
    %v265 = vld [vmem:[%s6] sm:$0x1]
    %v267 = vlaneseq
    %v268 = vshrl.u32 %v267, 7
    %v269 = vsub.s32 0, %v268
    %v270 = vrot.slane %v265, %v269
    %v272 = vadd.f32 %v262, %v270
    %vm273 = vcmask 31744
    %274 = vst.msk [vmem:[%s7] sm:$0xff] %vm273, %v272
    // Predicated region
    $region38: #{blob_model_forward.1} parent=1 // pred_check
      _
    $region39: #{blob_model_forward.1} parent=1 // pred_check_branch
      %276 = sbr.rel (0) target = $region41
    $region40: #{blob_model_forward.1} parent=1 // pred_region
      _
    $region41: #{blob_model_forward.1} parent=1 // pred_fallthru
      _
    // Predicated region
    $region42: #{blob_model_forward.1} parent=1 // pred_check
      _
    $region43: #{blob_model_forward.1} parent=1 // pred_check_branch
      %278 = sbr.rel (0) target = $region45
    $region44: #{blob_model_forward.1} parent=1 // pred_region
      _
    $region45: #{blob_model_forward.1} parent=1 // pred_fallthru
      _
    %279 = vsyncpa [#allocation3], 1
    %280 = vsyncpa [#allocation5], 1

</llo_original>
